<compile_context>
chip_gen: v6e
topology: v6e:2x2x1
jax: 0.10.0
libtpu: 0.0.40
codegen_flags: <defaults>
</compile_context>

<pallas_src>
import functools

import jax
import jax.numpy as jnp
from jax.experimental import pallas as pl
from jax.experimental.pallas import tpu as pltpu


def _embed_kernel(x_ref, w_ref, b_ref, o_ref):
    # x_ref: (TRg, g*K)   w_ref: (g*K, g*D)   b_ref: (1, g*D)   o_ref: (TRg, g*D)
    acc = jnp.dot(x_ref[...], w_ref[...], preferred_element_type=jnp.float32)
    o_ref[...] = (acc + b_ref[...].astype(jnp.float32)).astype(o_ref.dtype)


def _cdiv(a, b):
    return -(-a // b)


def _choose_tile_rows(rows, g, k_cat, d_model, in_itemsize, out_itemsize):
    """Pick a row tile (in tokens): big enough to amortize the ~0.35us/step
    pipeline overhead, small enough to leave VMEM headroom on all generations
    (v5e 16 MiB scoped default, v7x 64 MiB physical)."""
    sub = {4: 8, 2: 16, 1: 32}.get(out_itemsize, 8)   # sublane packing
    unit = sub * g  # tile granularity in tokens (keeps grouped rows aligned)
    # ~8 MiB budget for the double-buffered input + output tiles.
    budget_bytes = 8 * 1024 * 1024
    bytes_per_token = 2 * (k_cat * in_itemsize + d_model * out_itemsize)
    max_by_vmem = max(unit, budget_bytes // max(1, bytes_per_token))
    tile = min(2048, max_by_vmem)
    # Keep at least 2 grid steps when rows allow (v7x two-TensorCore sharding).
    if rows >= 2 * unit:
        tile = min(tile, max(unit, rows // 2))
    # Never tile past the (padded) data.
    tile = min(tile, _cdiv(rows, unit) * unit)
    return max(unit, (tile // unit) * unit)


@functools.partial(jax.jit, static_argnames=("tile_rows",))
def data_embedding_timefocus(x, x_mark, wv, bv, wm=None, bm=None, *,
                             tile_rows=None):
    """x: (B, L, F), x_mark: (B, L, Fm) or None -> (B, L, D)."""
    B, L, F = x.shape
    D = wv.shape[-1]
    rows = B * L
    out_dtype = x.dtype

    # --- Fuse value + mark embeddings into a single matmul. ---
    x2 = x.reshape(rows, F)
    if x_mark is not None:
        Fm = x_mark.shape[-1]
        x_cat = jnp.concatenate([x2, x_mark.reshape(rows, Fm)], axis=-1)
        w_cat = jnp.concatenate([wv, wm], axis=0)          # (F+Fm, D)
        b_cat = (bv + bm).reshape(1, D)
    else:
        x_cat, w_cat, b_cat = x2, wv, bv.reshape(1, D)
    K = x_cat.shape[-1]

    # --- Lane-dense output grouping when d_model < 128. ---
    g = 128 // D if (D < 128 and 128 % D == 0) else 1
    if g > 1:
        w_cat = jnp.kron(jnp.eye(g, dtype=w_cat.dtype), w_cat)   # (g*K, g*D)
        b_cat = jnp.tile(b_cat, (1, g))                          # (1, g*D)

    in_itemsize = jnp.dtype(x_cat.dtype).itemsize
    out_itemsize = jnp.dtype(out_dtype).itemsize
    if tile_rows is None:
        tile_rows = _choose_tile_rows(rows, g, K, D, in_itemsize, out_itemsize)

    # --- Pad token rows to a multiple of the tile (ragged sizes supported). ---
    rows_p = _cdiv(rows, tile_rows) * tile_rows
    if rows_p != rows:
        x_cat = jnp.pad(x_cat, ((0, rows_p - rows), (0, 0)))

    Rg = rows_p // g            # grouped rows
    TRg = tile_rows // g        # grouped rows per tile
    gK, gD = g * K, g * D
    x_grp = x_cat.reshape(Rg, gK)   # pure row-major regrouping (free)

    grid = (Rg // TRg,)

    # Explicit VMEM cap: generous headroom over the double-buffered tiles,
    # above v5e's 16 MiB scoped default, below v7x's 64 MiB physical.
    tile_bytes = 2 * TRg * (gK * in_itemsize + gD * out_itemsize)
    weight_bytes = gK * gD * jnp.dtype(w_cat.dtype).itemsize + gD * out_itemsize
    vmem_limit = int(min(48 * 1024 * 1024,
                         max(32 * 1024 * 1024, 4 * (tile_bytes + weight_bytes))))

    out = pl.pallas_call(
        _embed_kernel,
        out_shape=jax.ShapeDtypeStruct((Rg, gD), out_dtype),
        grid_spec=pltpu.PrefetchScalarGridSpec(
            num_scalar_prefetch=0,
            grid=grid,
            in_specs=[
                pl.BlockSpec((TRg, gK), lambda i: (i, 0)),   # fused input tile
                pl.BlockSpec((gK, gD), lambda i: (0, 0)),    # fused weight (resident)
                pl.BlockSpec((1, gD), lambda i: (0, 0)),     # fused bias (resident)
            ],
            out_specs=pl.BlockSpec((TRg, gD), lambda i: (i, 0)),
        ),
        compiler_params=pltpu.CompilerParams(
            dimension_semantics=("parallel",),
            vmem_limit_bytes=vmem_limit),
    )(x_grp, w_cat, b_cat)

    out = out.reshape(rows_p, D)[:rows]
    return out.reshape(B, L, D)


def _init_linear(key, fan_in, fan_out, dtype=jnp.float32):
    """Deterministic init mimicking nn.Linear (uniform +-1/sqrt(fan_in)).
    Weight returned already transposed to (fan_in, fan_out)."""
    kw, kb = jax.random.split(key)
    bound = 1.0 / jnp.sqrt(jnp.asarray(fan_in, dtype))
    w = jax.random.uniform(kw, (fan_in, fan_out), dtype, -bound, bound)
    b = jax.random.uniform(kb, (fan_out,), dtype, -bound, bound)
    return w, b


def _reference(x, x_mark, wv, bv, wm=None, bm=None):
    out = x @ wv + bv
    if x_mark is not None:
        out = out + (x_mark @ wm + bm)
    return out


if __name__ == "__main__":
    key = jax.random.PRNGKey(0)

    # Case 1: module demo shapes (d_model < 128 -> lane-dense grouping, g=4).
    B, L, F, Fm, D = 2, 8, 4, 3, 32
    k_x, k_xm, k_v, k_m, key = jax.random.split(key, 5)
    x = jax.random.normal(k_x, (B, L, F), jnp.float32)
    x_mark = jax.random.normal(k_xm, (B, L, Fm), jnp.float32)
    wv, bv = _init_linear(k_v, F, D)
    wm, bm = _init_linear(k_m, Fm, D)
    out = jax.block_until_ready(
        data_embedding_timefocus(x, x_mark, wv, bv, wm, bm))
    ref = _reference(x, x_mark, wv, bv, wm, bm)
    assert out.shape == (B, L, D)
    assert jnp.allclose(out, ref, atol=1e-5, rtol=1e-5)

    # Case 2: d_model >= 128 and ragged row count (exercises padding, grid >= 2).
    B, L, F, Fm, D = 3, 70, 7, 4, 128
    k_x, k_xm, k_v, k_m, key = jax.random.split(key, 5)
    x = jax.random.normal(k_x, (B, L, F), jnp.float32)
    x_mark = jax.random.normal(k_xm, (B, L, Fm), jnp.float32)
    wv, bv = _init_linear(k_v, F, D)
    wm, bm = _init_linear(k_m, Fm, D)
    out = jax.block_until_ready(
        data_embedding_timefocus(x, x_mark, wv, bv, wm, bm))
    ref = _reference(x, x_mark, wv, bv, wm, bm)
    assert jnp.allclose(out, ref, atol=1e-5, rtol=1e-5)

    # Case 3: x_mark is None (module's optional mark-embedding path).
    B, L, F, D = 2, 10, 5, 64
    k_x, k_v, key = jax.random.split(key, 3)
    x = jax.random.normal(k_x, (B, L, F), jnp.float32)
    wv, bv = _init_linear(k_v, F, D)
    out = jax.block_until_ready(data_embedding_timefocus(x, None, wv, bv))
    ref = _reference(x, None, wv, bv)
    assert jnp.allclose(out, ref, atol=1e-5, rtol=1e-5)

    print("KERNEL_OK")
</pallas_src>

<mosaic_0001>
module attributes {stable_mosaic.version = 11 : i64} {
  func.func @_embed_kernel(%arg0: i32, %arg1: memref<8x28xf32, #tpu.memory_space<vmem>>, %arg2: memref<28x128xf32, #tpu.memory_space<vmem>>, %arg3: memref<1x128xf32, #tpu.memory_space<vmem>>, %arg4: memref<8x128xf32, #tpu.memory_space<vmem>>) attributes {dimension_semantics = [#tpu.dimension_semantics<parallel>], iteration_bounds = array<i64: 1>, scalar_prefetch = 0 : i64, scratch_operands = 0 : i64, tpu.core_type = #tpu.core_type<tc>, window_params = [{transform_indices = @transform_0, window_bounds = array<i64: 8, 28>}, {pipeline_mode = #tpu.pipeline_mode<synchronous>, transform_indices = @transform_1, window_bounds = array<i64: 28, 128>}, {pipeline_mode = #tpu.pipeline_mode<synchronous>, transform_indices = @transform_2, window_bounds = array<i64: 1, 128>}, {transform_indices = @transform_3, window_bounds = array<i64: 8, 128>}]} {
    %c0 = arith.constant 0 : index
    %c0_0 = arith.constant 0 : index
    %0 = vector.load %arg1[%c0, %c0_0] : memref<8x28xf32, #tpu.memory_space<vmem>>, vector<8x28xf32>
    %c0_1 = arith.constant 0 : index
    %c0_2 = arith.constant 0 : index
    %1 = vector.load %arg2[%c0_1, %c0_2] : memref<28x128xf32, #tpu.memory_space<vmem>>, vector<28x128xf32>
    %cst = arith.constant dense<0.000000e+00> : vector<8x128xf32>
    %2 = tpu.matmul %0, %1, %cst {dimension_numbers = #tpu.dot_dimension_numbers<[1], [0], [0], [1], [0, 0, 1, 1], [], []>} : vector<8x28xf32>, vector<28x128xf32>, vector<8x128xf32> -> vector<8x128xf32>
    %c0_3 = arith.constant 0 : index
    %c0_4 = arith.constant 0 : index
    %3 = vector.load %arg3[%c0_3, %c0_4] : memref<1x128xf32, #tpu.memory_space<vmem>>, vector<1x128xf32>
    %4 = vector.broadcast %3 : vector<1x128xf32> to vector<8x128xf32>
    %5 = arith.addf %2, %4 : vector<8x128xf32>
    %c0_5 = arith.constant 0 : index
    %c0_6 = arith.constant 0 : index
    %6 = vector.load %arg4[%c0_5, %c0_6] : memref<8x128xf32, #tpu.memory_space<vmem>>, vector<8x128xf32>
    tpu.vector_store %arg4[%c0_5, %c0_6], %5 {strides = array<i32>} : memref<8x128xf32, #tpu.memory_space<vmem>>, vector<8x128xf32>,
    return
  }
  func.func @transform_0(%arg0: i32) -> (i32, i32) {
    %c0_i32 = arith.constant 0 : i32
    %c0_i32_0 = arith.constant 0 : i32
    return %arg0, %c0_i32 : i32, i32
  }
  func.func @transform_1(%arg0: i32) -> (i32, i32) {
    %c0_i32 = arith.constant 0 : i32
    %c0_i32_0 = arith.constant 0 : i32
    %c0_i32_1 = arith.constant 0 : i32
    return %c0_i32, %c0_i32_0 : i32, i32
  }
  func.func @transform_2(%arg0: i32) -> (i32, i32) {
    %c0_i32 = arith.constant 0 : i32
    %c0_i32_0 = arith.constant 0 : i32
    %c0_i32_1 = arith.constant 0 : i32
    return %c0_i32, %c0_i32_0 : i32, i32
  }
  func.func @transform_3(%arg0: i32) -> (i32, i32) {
    %c0_i32 = arith.constant 0 : i32
    %c0_i32_0 = arith.constant 0 : i32
    return %arg0, %c0_i32 : i32, i32
  }
}

</mosaic_0001>

<llo_original>
// kernel: data_embedding_timefocus.1
$region0: #{data_embedding_timefocus.1}
  #allocation0 [shape = 'u32[]', space=smem, size = 0x4, offset = 0x4, fixed_abs, tag = 'smem constant byte address 0x4 - core index']
  #allocation1 [shape = 'u32[144,128]{1,0:T(1,128)}', space=vmem, size = 0x12000, scoped, tag = 'internal scratch']
  %s0 = inlined_call_operand.vmem [shape: f32[8,28], index: 0, kind: input, shape index: {}]
  %s1 = inlined_call_operand.vmem [shape: f32[28,128], index: 1, kind: input, shape index: {}]
  %s2 = inlined_call_operand.vmem [shape: f32[1,128], index: 2, kind: input, shape index: {}]
  %s3 = inlined_call_operand.vmem [shape: f32[8,128], index: 3, kind: output, shape index: {}]
  %s4 = sld [smem:[#allocation0]]
  $region22: #{data_embedding_timefocus.1} parent=0
    _
  %s6 = ssub.s32 1, %s4
  %s7 = scalar_select 0, %s6, %s4
  // Predicated region
  $region2: #{data_embedding_timefocus.1} parent=0 // pred_check
    _
  $region3: #{data_embedding_timefocus.1} parent=0 // pred_check_branch
    %9 = sbr.rel (0) target = $region5
  $region4: #{data_embedding_timefocus.1} parent=0 // pred_region
    _
  $region5: #{data_embedding_timefocus.1} parent=0 // pred_fallthru
    _
  // Predicated region
  $region6: #{data_embedding_timefocus.1} parent=0 // pred_check
    _
  $region7: #{data_embedding_timefocus.1} parent=0 // pred_check_branch
    %11 = sbr.rel (0) target = $region9
  $region8: #{data_embedding_timefocus.1} parent=0 // pred_region
    _
  $region9: #{data_embedding_timefocus.1} parent=0 // pred_fallthru
    _
  // Predicated region
  $region10: #{data_embedding_timefocus.1} parent=0 // pred_check
    _
  $region11: #{data_embedding_timefocus.1} parent=0 // pred_check_branch
    %13 = sbr.rel (0) target = $region13
  $region12: #{data_embedding_timefocus.1} parent=0 // pred_region
    _
  $region13: #{data_embedding_timefocus.1} parent=0 // pred_fallthru
    _
  %v14 = vld [vmem:[%s0] sm:$0xff]
  %v15 = vld [vmem:[%s1] sm:$0xff]
  %v16 = vld [vmem:[%s1 + $0x8] sm:$0xff]
  %v17 = vld [vmem:[%s1 + $0x10] sm:$0xff]
  %v18 = vld [vmem:[%s1 + $0x18] sm:$0xf]
  %v19 = vld [vmem:[%s2] sm:$0x1]
  %v21 = vlaneseq
  %v22 = vshrl.u32 %v21, 7
  %v23 = vsub.s32 0, %v22
  %v24 = vrot.slane %v19, %v23
  %vm26 = vcmask 228352
  %v28 = vsel %vm26, %v14, 0
  %vm30 = vcmask 1043456
  %v32 = vsel %vm30, %v18, 0
  %34 = vmatprep.subr.mxu0 0.0
  %35 = vmatpush1.msra.mxu0 0.0
  %36 = vmatprep.subr.mxu0 0.0
  %37 = vmatpush1.msra.mxu0 0.0
  %38 = vmatprep.subr.mxu0 0.0
  %39 = vmatpush1.msra.mxu0 0.0
  %40 = vmatprep.subr.mxu0 0.0
  %41 = vmatpush1.msra.mxu0 0.0
  %42 = vmatprep.subr.mxu0 0.0
  %43 = vmatpush1.msra.mxu0 0.0
  %44 = vmatprep.subr.mxu0 0.0
  %45 = vmatpush1.msra.mxu0 0.0
  %46 = vmatprep.subr.mxu0 0.0
  %47 = vmatpush1.msra.mxu0 0.0
  %48 = vmatprep.subr.mxu0 0.0
  %49 = vmatpush1.msra.mxu0 0.0
  %50 = vmatprep.subr.mxu0 0.0
  %51 = vmatpush1.msra.mxu0 0.0
  %52 = vmatprep.subr.mxu0 0.0
  %53 = vmatpush1.msra.mxu0 0.0
  %54 = vmatprep.subr.mxu0 0.0
  %55 = vmatpush1.msra.mxu0 0.0
  %56 = vmatprep.subr.mxu0 0.0
  %57 = vmatpush1.msra.mxu0 0.0
  %58 = vmatprep.subr.mxu0 0.0
  %59 = vmatpush1.msra.mxu0 %v32
  %60 = vmatprep.subr.mxu0 0.0
  %61 = vmatpush1.msra.mxu0 %v17
  %62 = vmatprep.subr.mxu0 0.0
  %63 = vmatpush1.msra.mxu0 %v16
  %64 = vmatprep.subr.mxu0 0.0
  %65 = vmatpush1.msra.mxu0 %v15
  %66 = vmatprep.subr.mxu0 0.0
  %67 = vmatpush2.msra.mxu0 0.0
  %68 = vmatprep.subr.mxu0 0.0
  %69 = vmatpush2.msra.mxu0 0.0
  %70 = vmatprep.subr.mxu0 0.0
  %71 = vmatpush2.msra.mxu0 0.0
  %72 = vmatprep.subr.mxu0 0.0
  %73 = vmatpush2.msra.mxu0 0.0
  %74 = vmatprep.subr.mxu0 0.0
  %75 = vmatpush2.msra.mxu0 0.0
  %76 = vmatprep.subr.mxu0 0.0
  %77 = vmatpush2.msra.mxu0 0.0
  %78 = vmatprep.subr.mxu0 0.0
  %79 = vmatpush2.msra.mxu0 0.0
  %80 = vmatprep.subr.mxu0 0.0
  %81 = vmatpush2.msra.mxu0 0.0
  %82 = vmatprep.subr.mxu0 0.0
  %83 = vmatpush2.msra.mxu0 0.0
  %84 = vmatprep.subr.mxu0 0.0
  %85 = vmatpush2.msra.mxu0 0.0
  %86 = vmatprep.subr.mxu0 0.0
  %87 = vmatpush2.msra.mxu0 0.0
  %88 = vmatprep.subr.mxu0 0.0
  %89 = vmatpush2.msra.mxu0 0.0
  %90 = vmatprep.subr.mxu0 0.0
  %91 = vmatpush2.msra.mxu0 0.0
  %92 = vmatprep.subr.mxu0 0.0
  %93 = vmatpush2.msra.mxu0 0.0
  %94 = vmatprep.subr.mxu0 0.0
  %95 = vmatpush2.msra.mxu0 0.0
  %96 = vmatprep.subr.mxu0 0.0
  %97 = vmatpush2.msra.mxu0 0.0
  %98 = vmatprep.mubr.f32.mxu0 0.0
  %99 = vmatmul.mubr.f32.gmra.mxu0 %v28
  %v100 = vpop.f32.mrf.mxu0
  %v101 = vadd.f32 %v24, %v100
  %v102 = vpop.f32.mrf.mxu0
  %103 = vdwg.mxu0
  %104 = vst [vmem:[%s3] sm:$0xff] %v101
  // Predicated region
  $region14: #{data_embedding_timefocus.1} parent=0 // pred_check
    _
  $region15: #{data_embedding_timefocus.1} parent=0 // pred_check_branch
    %106 = sbr.rel (0) target = $region17
  $region16: #{data_embedding_timefocus.1} parent=0 // pred_region
    _
  $region17: #{data_embedding_timefocus.1} parent=0 // pred_fallthru
    _
  // Predicated region
  $region18: #{data_embedding_timefocus.1} parent=0 // pred_check
    _
  $region19: #{data_embedding_timefocus.1} parent=0 // pred_check_branch
    %108 = sbr.rel (0) target = $region21
  $region20: #{data_embedding_timefocus.1} parent=0 // pred_region
    _
  $region21: #{data_embedding_timefocus.1} parent=0 // pred_fallthru
    _

</llo_original>
